<compile_context>
chip_gen: v5e
topology: v5e:2x2
jax: 0.10.0
libtpu: 0.0.40
codegen_flags: <defaults>
</compile_context>

<pallas_src>
import jax
import jax.numpy as jnp
from jax.experimental import pallas as pl
from jax.experimental.pallas import tpu as pltpu


def _add_pos_kernel(x_ref, pos_ref, o_ref):
    # Pure VPU elementwise add; pos_ref is (1, tn) and broadcasts over the
    # (tb, tn) batch-row block. Kernel is HBM-bound, so the broadcast is free
    # (VPU slot has slack).
    o_ref[...] = x_ref[...] + pos_ref[...]


def _chip_config():
    """Best-effort chip detection -> (num_tensorcores, target_bytes, max_block_bytes)."""
    kind = ""
    try:
        kind = jax.devices()[0].device_kind.lower()
    except Exception:
        pass
    is_v7 = "v7" in kind
    is_v5e = ("v5e" in kind) or ("v5 lite" in kind) or ("v5lite" in kind)
    num_cores = 2 if is_v7 else 1          # v7x: 2 TCs/chip; v5e/v6e: 1 TC.
    if is_v7:
        # 3.2 TB/s HBM: a 1 MiB block streams in ~0.6 us, so the ~0.35 us/step
        # overhead bites hard -> push to ~4 MiB blocks. 4 double-buffered 4 MiB
        # blocks (x + out) + pos stay well under the 32 MiB scoped default.
        return num_cores, 4 << 20, 4 << 20
    if is_v5e:
        # 16 MiB default scoped VMEM: keep blocks <= 2 MiB (4x2 MiB + pos fits).
        return num_cores, 2 << 20, 2 << 20
    # v6e / unknown: 32 MiB default scoped VMEM.
    return num_cores, 2 << 20, 4 << 20


def _choose_tiling(B, ND, itemsize, num_cores, target_bytes, max_block_bytes):
    """Return (tb, tn, use_2d) block sizes for the flattened (B, N*D) slab."""
    # Sublane packing multiple: 8 rows for 32-bit, 16 for bf16, 32 for int8/fp8.
    pack = 8 * max(1, 4 // itemsize)
    row_bytes = ND * itemsize

    # Very wide rows: even the minimum dense-packed row-block exceeds the cap.
    # Tile the lane dim too (multiple of 128) and keep blocks near the target,
    # avoiding scoped/physical VMEM blowups for huge N*D.
    if row_bytes * min(pack, B) > max_block_bytes:
        tb = min(pack, B)
        tn = max(128, (target_bytes // (tb * itemsize)) // 128 * 128)
        if tn >= ND:
            tn = ND
        return tb, tn, True

    total_bytes = B * row_bytes
    if total_bytes <= target_bytes:
        # Fits in one block. Only split for multi-TC chips (v7x); on a single
        # TC an extra grid step is pure overhead (~0.35 us + smaller DMAs).
        if num_cores >= 2 and B % (2 * pack) == 0:
            return B // 2, ND, False
        return B, ND, False

    # Multi-block: pick the step count from the byte target, round it up to a
    # multiple of the TC count (even split across cores), then size the row
    # block so it stays near the target (no pack-floor halving the block).
    n_steps = pl.cdiv(total_bytes, target_bytes)
    if num_cores > 1 and n_steps > 1:
        n_steps = pl.cdiv(n_steps, num_cores) * num_cores
    tb = pack * pl.cdiv(B, pack * n_steps)
    cap_rows = max(1, max_block_bytes // row_bytes)
    if tb > cap_rows:
        tb = max(pack, (cap_rows // pack) * pack)
    if tb >= B:
        tb = B
    return tb, ND, False


def position_embedding(x, pos_embedding):
    """x: (B, N, D), pos_embedding: (1, N, D) -> (B, N, D) = x + pos_embedding."""
    B, N, D = x.shape
    assert pos_embedding.shape == (1, N, D)
    ND = N * D
    itemsize = jnp.dtype(x.dtype).itemsize

    num_cores, target_bytes, max_block_bytes = _chip_config()
    tb, tn, use_2d = _choose_tiling(B, ND, itemsize, num_cores,
                                    target_bytes, max_block_bytes)

    # Lane-dense slab layout: (B, N*D); pos becomes a single (1, N*D) row.
    x2 = x.reshape(B, ND)
    pos2 = pos_embedding.reshape(1, ND)

    if use_2d:
        grid = (pl.cdiv(B, tb), pl.cdiv(ND, tn))
        in_specs = [
            pl.BlockSpec((tb, tn), lambda i, j: (i, j)),
            pl.BlockSpec((1, tn), lambda i, j: (0, j)),
        ]
        out_specs = pl.BlockSpec((tb, tn), lambda i, j: (i, j))
        dim_sem = ("parallel", "parallel")
    else:
        grid = (pl.cdiv(B, tb),)
        in_specs = [
            # tb batch rows per step; lane dim is the full N*D extent.
            pl.BlockSpec((tb, ND), lambda i: (i, 0)),
            # Constant block index -> pos stays VMEM-resident across grid steps.
            pl.BlockSpec((1, ND), lambda i: (0, 0)),
        ]
        out_specs = pl.BlockSpec((tb, ND), lambda i: (i, 0))
        dim_sem = ("parallel",)

    out2 = pl.pallas_call(
        _add_pos_kernel,
        out_shape=jax.ShapeDtypeStruct((B, ND), x.dtype),
        grid_spec=pl.GridSpec(grid=grid, in_specs=in_specs, out_specs=out_specs),
        compiler_params=pltpu.CompilerParams(dimension_semantics=dim_sem),
        # Advisory roofline for XLA's scheduler: bytes-bound, no transcendentals.
        cost_estimate=pl.CostEstimate(
            flops=B * ND,
            transcendentals=0,
            bytes_accessed=(2 * B * ND + ND) * itemsize,
        ),
    )(x2, pos2)

    return out2.reshape(B, N, D)


if __name__ == "__main__":
    # Module config: PositionEmbedding(num_patches=8, embed_dim=32)
    num_patches = 8
    embed_dim = 32
    batch = 2
    seq = num_patches + 1  # num_patches + 1 (cls token slot)

    key = jax.random.PRNGKey(0)
    k1, k2, k3, k4, k5, k6, k7, k8 = jax.random.split(key, 8)

    # --- Test 1: module-sized shapes (single full-extent block). ---
    pos_embedding = jax.random.normal(k1, (1, seq, embed_dim), dtype=jnp.float32)
    x = jax.random.normal(k2, (batch, seq, embed_dim), dtype=jnp.float32)
    out = position_embedding(x, pos_embedding)
    jax.block_until_ready(out)
    assert out.shape == (batch, seq, embed_dim)
    assert jnp.allclose(out, x + pos_embedding, atol=1e-6, rtol=1e-6)

    # --- Test 2: multi-block grid with non-divisible batch (partial last
    # block exercises Pallas OOB masking on the output). ---
    B2, N2, D2 = 50, 65, 256
    pos_big = jax.random.normal(k3, (1, N2, D2), dtype=jnp.float32)
    x_big = jax.random.normal(k4, (B2, N2, D2), dtype=jnp.float32)
    out_big = position_embedding(x_big, pos_big)
    jax.block_until_ready(out_big)
    assert jnp.allclose(out_big, x_big + pos_big, atol=1e-6, rtol=1e-6)

    # --- Test 3: very wide rows (row_bytes >> block cap) -> 2-D lane tiling
    # path; keeps blocks at the 1-4 MiB sweet spot instead of VMEM-OOMing. ---
    B3, N3, D3 = 2, 2049, 2048
    pos_wide = jax.random.normal(k5, (1, N3, D3), dtype=jnp.float32)
    x_wide = jax.random.normal(k6, (B3, N3, D3), dtype=jnp.float32)
    out_wide = position_embedding(x_wide, pos_wide)
    jax.block_until_ready(out_wide)
    assert jnp.allclose(out_wide, x_wide + pos_wide, atol=1e-6, rtol=1e-6)

    # --- Test 4: bf16 path (dtype-aware sublane packing, pack=16). ---
    B4, N4, D4 = 32, 9, 128
    pos_bf = jax.random.normal(k7, (1, N4, D4), dtype=jnp.bfloat16)
    x_bf = jax.random.normal(k8, (B4, N4, D4), dtype=jnp.bfloat16)
    out_bf = position_embedding(x_bf, pos_bf)
    jax.block_until_ready(out_bf)
    assert jnp.allclose(out_bf, x_bf + pos_bf, atol=1e-2, rtol=1e-2)

    print("KERNEL_OK")
</pallas_src>

<mosaic_0001>
module attributes {stable_mosaic.version = 11 : i64} {
  func.func @_add_pos_kernel(%arg0: i32, %arg1: memref<2x288xf32, #tpu.memory_space<vmem>>, %arg2: memref<1x288xf32, #tpu.memory_space<vmem>>, %arg3: memref<2x288xf32, #tpu.memory_space<vmem>>) attributes {dimension_semantics = [#tpu.dimension_semantics<parallel>], iteration_bounds = array<i64: 1>, scalar_prefetch = 0 : i64, scratch_operands = 0 : i64, tpu.core_type = #tpu.core_type<tc>, window_params = [{transform_indices = @transform_0, window_bounds = array<i64: 2, 288>}, {pipeline_mode = #tpu.pipeline_mode<synchronous>, transform_indices = @transform_1, window_bounds = array<i64: 1, 288>}, {transform_indices = @transform_2, window_bounds = array<i64: 2, 288>}]} {
    %c0 = arith.constant 0 : index
    %c0_0 = arith.constant 0 : index
    %0 = vector.load %arg1[%c0, %c0_0] : memref<2x288xf32, #tpu.memory_space<vmem>>, vector<2x288xf32>
    %c0_1 = arith.constant 0 : index
    %c0_2 = arith.constant 0 : index
    %1 = vector.load %arg2[%c0_1, %c0_2] : memref<1x288xf32, #tpu.memory_space<vmem>>, vector<1x288xf32>
    %2 = vector.broadcast %1 : vector<1x288xf32> to vector<2x288xf32>
    %3 = arith.addf %0, %2 : vector<2x288xf32>
    %c0_3 = arith.constant 0 : index
    %c0_4 = arith.constant 0 : index
    %4 = vector.load %arg3[%c0_3, %c0_4] : memref<2x288xf32, #tpu.memory_space<vmem>>, vector<2x288xf32>
    tpu.vector_store %arg3[%c0_3, %c0_4], %3 {strides = array<i32>} : memref<2x288xf32, #tpu.memory_space<vmem>>, vector<2x288xf32>,
    return
  }
  func.func @transform_0(%arg0: i32) -> (i32, i32) {
    %c0_i32 = arith.constant 0 : i32
    %c0_i32_0 = arith.constant 0 : i32
    return %arg0, %c0_i32 : i32, i32
  }
  func.func @transform_1(%arg0: i32) -> (i32, i32) {
    %c0_i32 = arith.constant 0 : i32
    %c0_i32_0 = arith.constant 0 : i32
    %c0_i32_1 = arith.constant 0 : i32
    return %c0_i32, %c0_i32_0 : i32, i32
  }
  func.func @transform_2(%arg0: i32) -> (i32, i32) {
    %c0_i32 = arith.constant 0 : i32
    %c0_i32_0 = arith.constant 0 : i32
    return %arg0, %c0_i32 : i32, i32
  }
}

</mosaic_0001>

<llo_original>
// kernel: tpu_custom_call.1
$region0: #{tpu_custom_call.1}
  #allocation0 [shape = 'u32[]', space=smem, size = 0x4, offset = 0x4, fixed_abs, tag = 'smem constant byte address 0x4 - core index']
  #allocation1 [shape = 'u32[72,128]{1,0:T(1,128)}', space=vmem, size = 0x9000, scoped, tag = 'internal scratch']
  %s0 = inlined_call_operand.hbm [shape: f32[2,288], index: 0, kind: input, shape index: {}]
  %s1 = inlined_call_operand.hbm [shape: f32[1,288], index: 1, kind: input, shape index: {}]
  %s2 = inlined_call_operand.hbm [shape: f32[2,288], index: 2, kind: output, shape index: {}]
  %s3 = sld [smem:[#allocation0]]
  $region26: #{tpu_custom_call.1} parent=0
    _
  %s5 = ssub.s32 1, %s3
  %s6 = scalar_select 0, %s5, %s3
  $region1: #{tpu_custom_call.1} parent=0
    #allocation2 [shape = 'u8[3072]{0}', space=vmem, size = 0xc00, scoped, tag = 'input window, operand 0, single buffered']
    #allocation3 [shape = 's32[1]{0}', space=sflag, size = 0x4, scoped, tag = 'scoped memory for tpu_custom_call.1']
    #allocation4 [shape = 's32[1]{0}', space=sflag, size = 0x4, scoped, tag = 'scoped memory for tpu_custom_call.1']
    #allocation5 [shape = 'u8[1536]{0}', space=vmem, size = 0x800, scoped, tag = 'input window, operand 1, single buffered']
    #allocation6 [shape = 's32[1]{0}', space=sflag, size = 0x4, scoped, tag = 'scoped memory for tpu_custom_call.1']
    #allocation7 [shape = 'u8[3072]{0}', space=vmem, size = 0xc00, scoped, tag = 'output window, operand 0, single buffered']
    %7 = vsyncpa [#allocation3], 0
    %8 = vsyncpa [#allocation6], 0
    %9 = vsyncpa [#allocation4], 0
    // Predicated region
    $region2: #{tpu_custom_call.1} parent=1 // pred_check
      _
    $region3: #{tpu_custom_call.1} parent=1 // pred_check_branch
      %11 = sbr.rel (0) target = $region5
    $region4: #{tpu_custom_call.1} parent=1 // pred_region
      %13 = vsyncadd [#allocation3], 0
      %s15 = sshll.u32 %s0, 4
      %s16 = int_to_ptr.hbm [resolvable:$true] %s15
      %s17 = sshll.u32 [#allocation2], 4
      %s18 = int_to_ptr.vmem [resolvable:$true] %s17
      %20 = dma.hbm_to_vmem [thread:$0]  %s16, 96, %s18, [#allocation3]
    $region5: #{tpu_custom_call.1} parent=1 // pred_fallthru
      _
    // Predicated region
    $region6: #{tpu_custom_call.1} parent=1 // pred_check
      _
    $region7: #{tpu_custom_call.1} parent=1 // pred_check_branch
      %22 = sbr.rel (0) target = $region9
    $region8: #{tpu_custom_call.1} parent=1 // pred_region
      %24 = vsyncadd [#allocation6], 0
      %s26 = sshll.u32 %s1, 4
      %s27 = int_to_ptr.hbm [resolvable:$true] %s26
      %s28 = sshll.u32 [#allocation5], 4
      %s29 = int_to_ptr.vmem [resolvable:$true] %s28
      %31 = dma.hbm_to_vmem [thread:$0]  %s27, 48, %s29, [#allocation6]
    $region9: #{tpu_custom_call.1} parent=1 // pred_fallthru
      _
    // Predicated region
    $region10: #{tpu_custom_call.1} parent=1 // pred_check
      _
    $region11: #{tpu_custom_call.1} parent=1 // pred_check_branch
      %33 = sbr.rel (0) target = $region13
    $region12: #{tpu_custom_call.1} parent=1 // pred_region
      %35 = dma.done [#allocation3], 96
    $region13: #{tpu_custom_call.1} parent=1 // pred_fallthru
      _
    // Predicated region
    $region14: #{tpu_custom_call.1} parent=1 // pred_check
      _
    $region15: #{tpu_custom_call.1} parent=1 // pred_check_branch
      %37 = sbr.rel (0) target = $region17
    $region16: #{tpu_custom_call.1} parent=1 // pred_region
      %39 = dma.done [#allocation6], 48
    $region17: #{tpu_custom_call.1} parent=1 // pred_fallthru
      _
    %v40 = vld [vmem:[#allocation2] sm:$0x3f]
    %v41 = vld [vmem:[#allocation5] sm:$0x7]
    %v43 = vperm.slane %v41, 0
    %v44 = vperm.slane %v41, 1
    %v45 = vperm.slane %v41, 2
    %v46 = vrot.slane %v44, 6
    %v47 = vrot.slane %v45, 4
    %vm48 = vcmask 1041408
    %v49 = vsel %vm48, %v43, %v46
    %vm50 = vcmask 1043456
    %v51 = vsel %vm50, %v49, %v47
    %v53 = vadd.f32 %v40, %v51
    %vm54 = vcmask 1043458
    %vm55 = vmor %vm54, %vm48
    %vm56 = vcmask 259076
    %vm57 = vmor %vm56, %vm55
    %58 = vst.msk [vmem:[#allocation7] sm:$0x3f] %vm57, %v53
    // Predicated region
    $region18: #{tpu_custom_call.1} parent=1 // pred_check
      _
    $region19: #{tpu_custom_call.1} parent=1 // pred_check_branch
      %60 = sbr.rel (0) target = $region21
    $region20: #{tpu_custom_call.1} parent=1 // pred_region
      %62 = vsyncadd [#allocation4], 0
      %s64 = sshll.u32 [#allocation7], 4
      %s65 = int_to_ptr.vmem [resolvable:$true] %s64
      %s66 = sshll.u32 %s2, 4
      %s67 = int_to_ptr.hbm [resolvable:$true] %s66
      %69 = dma.vmem_to_hbm [thread:$0]  %s65, 96, %s67, [#allocation4]
    $region21: #{tpu_custom_call.1} parent=1 // pred_fallthru
      _
    // Predicated region
    $region22: #{tpu_custom_call.1} parent=1 // pred_check
      _
    $region23: #{tpu_custom_call.1} parent=1 // pred_check_branch
      %71 = sbr.rel (0) target = $region25
    $region24: #{tpu_custom_call.1} parent=1 // pred_region
      %73 = dma.done [#allocation4], 96
    $region25: #{tpu_custom_call.1} parent=1 // pred_fallthru
      _
    %74 = vsyncpa [#allocation3], 1
    %75 = vsyncpa [#allocation6], 1
    %76 = vsyncpa [#allocation4], 1

</llo_original>
